<compile_context>
chip_gen: v7x
topology: tpu7x:2x2x1
jax: 0.10.0
libtpu: 0.0.40
codegen_flags: <defaults>
</compile_context>

<pallas_src>
import jax
import jax.numpy as jnp
from jax.experimental import pallas as pl
from jax.experimental.pallas import tpu as pltpu


_NEG_MASK = -1e30  # bias for padded class columns -> exp(...) == 0


def _round_up(x: int, m: int) -> int:
    return ((x + m - 1) // m) * m


def softmax_classifier_kernel(x_ref, w_ref, b_ref, o_ref, acc_ref):
    k = pl.program_id(1)

    @pl.when(k == 0)
    def _():
        acc_ref[...] = jnp.zeros_like(acc_ref)

    # MXU matmul on bf16 tiles, f32 accumulation in VMEM scratch.
    acc_ref[...] += jnp.dot(
        x_ref[...], w_ref[...], preferred_element_type=jnp.float32)

    @pl.when(k == pl.num_programs(1) - 1)
    def _():
        z = acc_ref[...] + b_ref[...]  # (TB, C_pad); padded cols get -1e30

        # Numerically stable softmax over the class (last) axis.
        z_max = jnp.max(z, axis=-1, keepdims=True)
        e = jnp.exp(z - z_max)
        denom = jnp.sum(e, axis=-1, keepdims=True)

        # EUP approximate reciprocal + one Newton step (full f32 accuracy).
        r = pl.reciprocal(denom, approx=True)
        r = r * (2.0 - denom * r)

        o_ref[...] = (e * r).astype(o_ref.dtype)


def _choose_tiles(B, F_pad, C_pad):
    """Pick (TB, TK) so double-buffered tiles + accumulator fit VMEM easily."""
    TK = F_pad if F_pad <= 512 else 512
    TB = min(256, _round_up(B, 8))

    def vmem_bytes(tb):
        return (tb * C_pad * 4            # f32 accumulator scratch
                + 2 * tb * C_pad * 4      # output double buffer (f32)
                + 2 * tb * TK * 2         # X double buffer (bf16)
                + 2 * TK * C_pad * 2      # W double buffer (bf16)
                + 2 * C_pad * 4)          # bias

    while TB > 8 and vmem_bytes(TB) > 40 * 1024 * 1024:
        TB = max(8, ((TB // 2) // 8) * 8)
    return TB, TK


def softmax_classifier(x, w, b):
    """x: (B, F) f32; w: (F, C) f32; b: (C,) f32 -> (B, C) f32 softmax probs."""
    B, F = x.shape
    F_w, C = w.shape
    assert F_w == F and b.shape == (C,)

    # ---- padding: classes to 128 lanes; features to a K-tile multiple -------
    C_pad = _round_up(max(C, 128), 128)
    F_pad = F if F <= 512 else _round_up(F, 512)

    TB, TK = _choose_tiles(B, F_pad, C_pad)
    B_pad = _round_up(B, TB)

    # ---- pad & cast operands (zero-padding contributes 0 to the matmul) -----
    x_p = jnp.zeros((B_pad, F_pad), jnp.bfloat16)
    x_p = x_p.at[:B, :F].set(x.astype(jnp.bfloat16))
    w_p = jnp.zeros((F_pad, C_pad), jnp.bfloat16)
    w_p = w_p.at[:F, :C].set(w.astype(jnp.bfloat16))
    b_p = jnp.full((1, C_pad), _NEG_MASK, jnp.float32)
    b_p = b_p.at[0, :C].set(b.astype(jnp.float32))

    grid = (B_pad // TB, F_pad // TK)

    out = pl.pallas_call(
        softmax_classifier_kernel,
        out_shape=jax.ShapeDtypeStruct((B_pad, C_pad), jnp.float32),
        grid_spec=pltpu.PrefetchScalarGridSpec(
            num_scalar_prefetch=0,
            grid=grid,
            in_specs=[
                pl.BlockSpec((TB, TK), lambda i, k: (i, k)),      # X tile
                pl.BlockSpec((TK, C_pad), lambda i, k: (k, 0)),   # W K-slab
                pl.BlockSpec((1, C_pad), lambda i, k: (0, 0)),    # bias resident
            ],
            out_specs=pl.BlockSpec((TB, C_pad), lambda i, k: (i, 0)),
            scratch_shapes=[pltpu.VMEM((TB, C_pad), jnp.float32)],
        ),
        compiler_params=pltpu.CompilerParams(
            dimension_semantics=("parallel", "arbitrary"),
            vmem_limit_bytes=48 * 1024 * 1024,  # headroom under v7x's 64 MiB
        ),
        cost_estimate=pl.CostEstimate(
            flops=2 * B_pad * F_pad * C_pad,
            transcendentals=B_pad * C_pad,
            bytes_accessed=(B_pad * F_pad * 2 + F_pad * C_pad * 2
                            + B_pad * C_pad * 4 + C_pad * 4),
        ),
    )(x_p, w_p, b_p)

    return out[:B, :C]


def reference(x, w, b):
    # Same precision recipe as the kernel (bf16 MXU operands, f32 accumulate).
    z = jnp.dot(x.astype(jnp.bfloat16), w.astype(jnp.bfloat16),
                preferred_element_type=jnp.float32) + b[None, :]
    z = z - jnp.max(z, axis=1, keepdims=True)
    e = jnp.exp(z)
    return e / jnp.sum(e, axis=1, keepdims=True)


def reference_f32(x, w, b):
    z = x @ w + b[None, :]
    z = z - jnp.max(z, axis=1, keepdims=True)
    e = jnp.exp(z)
    return e / jnp.sum(e, axis=1, keepdims=True)


if __name__ == "__main__":
    # Small shapes consistent with the module: batch=8, num_feature=32, num_class=16.
    key = jax.random.PRNGKey(0)
    kx, kw, kb = jax.random.split(key, 3)

    batch, num_feature, num_class = 8, 32, 16

    x = jax.random.normal(kx, (batch, num_feature), dtype=jnp.float32)
    # Deterministic init mimicking nn.Linear's uniform(-1/sqrt(F), 1/sqrt(F)).
    bound = 1.0 / jnp.sqrt(jnp.float32(num_feature))
    # torch stores weight as (num_class, num_feature); we keep its transpose (F, C).
    w = jax.random.uniform(kw, (num_feature, num_class),
                           minval=-bound, maxval=bound, dtype=jnp.float32)
    b = jax.random.uniform(kb, (num_class,),
                           minval=-bound, maxval=bound, dtype=jnp.float32)

    out = softmax_classifier(x, w, b)
    out = jax.block_until_ready(out)

    assert out.shape == (batch, num_class)
    # Exact-recipe reference (bf16 MXU operands, f32 accumulate).
    ref = reference(x, w, b)
    assert jnp.allclose(out, ref, atol=1e-5, rtol=1e-5), "mismatch vs bf16-matmul reference"
    # Sanity vs pure-f32 math (bf16 input rounding only).
    ref32 = reference_f32(x, w, b)
    assert jnp.allclose(out, ref32, atol=2e-2, rtol=2e-2), "mismatch vs f32 reference"
    # Softmax rows must sum to 1 (Newton-corrected reciprocal keeps this tight).
    assert jnp.allclose(jnp.sum(out, axis=1), 1.0, atol=1e-5), "rows must sum to 1"

    print("KERNEL_OK")
</pallas_src>

<mosaic_0001>
module attributes {stable_mosaic.version = 11 : i64} {
  func.func @softmax_classifier_kernel(%arg0: i32, %arg1: i32, %arg2: memref<8x32xbf16, #tpu.memory_space<vmem>>, %arg3: memref<32x128xbf16, #tpu.memory_space<vmem>>, %arg4: memref<1x128xf32, #tpu.memory_space<vmem>>, %arg5: memref<8x128xf32, #tpu.memory_space<vmem>>, %arg6: memref<8x128xf32, #tpu.memory_space<vmem>>) attributes {dimension_semantics = [#tpu.dimension_semantics<parallel>, #tpu.dimension_semantics<arbitrary>], iteration_bounds = array<i64: 1, 1>, scalar_prefetch = 0 : i64, scratch_operands = 1 : i64, tpu.core_type = #tpu.core_type<tc>, window_params = [{transform_indices = @transform_0, window_bounds = array<i64: 8, 32>}, {transform_indices = @transform_1, window_bounds = array<i64: 32, 128>}, {pipeline_mode = #tpu.pipeline_mode<synchronous>, transform_indices = @transform_2, window_bounds = array<i64: 1, 128>}, {transform_indices = @transform_3, window_bounds = array<i64: 8, 128>}]} {
    %c0_i32 = arith.constant 0 : i32
    %0 = arith.cmpi eq, %arg1, %c0_i32 : i32
    %1 = arith.extui %0 : i1 to i32
    %c0_i32_0 = arith.constant 0 : i32
    %2 = arith.cmpi ne, %1, %c0_i32_0 : i32
    scf.if %2 {
      %cst_10 = arith.constant 0.000000e+00 : f32
      %12 = vector.broadcast %cst_10 : f32 to vector<8x128xf32>
      %c0_11 = arith.constant 0 : index
      %c0_12 = arith.constant 0 : index
      %13 = vector.load %arg6[%c0_11, %c0_12] : memref<8x128xf32, #tpu.memory_space<vmem>>, vector<8x128xf32>
      tpu.vector_store %arg6[%c0_11, %c0_12], %12 {strides = array<i32>} : memref<8x128xf32, #tpu.memory_space<vmem>>, vector<8x128xf32>,
    } else {
    }
    %c0 = arith.constant 0 : index
    %c0_1 = arith.constant 0 : index
    %3 = vector.load %arg6[%c0, %c0_1] : memref<8x128xf32, #tpu.memory_space<vmem>>, vector<8x128xf32>
    %c0_2 = arith.constant 0 : index
    %c0_3 = arith.constant 0 : index
    %4 = vector.load %arg2[%c0_2, %c0_3] : memref<8x32xbf16, #tpu.memory_space<vmem>>, vector<8x32xbf16>
    %c0_4 = arith.constant 0 : index
    %c0_5 = arith.constant 0 : index
    %5 = vector.load %arg3[%c0_4, %c0_5] : memref<32x128xbf16, #tpu.memory_space<vmem>>, vector<32x128xbf16>
    %cst = arith.constant dense<0.000000e+00> : vector<8x128xf32>
    %6 = tpu.matmul %4, %5, %cst {dimension_numbers = #tpu.dot_dimension_numbers<[1], [0], [0], [1], [0, 0, 1, 1], [], []>} : vector<8x32xbf16>, vector<32x128xbf16>, vector<8x128xf32> -> vector<8x128xf32>
    %7 = arith.addf %3, %6 : vector<8x128xf32>
    %c0_6 = arith.constant 0 : index
    %c0_7 = arith.constant 0 : index
    %8 = vector.load %arg6[%c0_6, %c0_7] : memref<8x128xf32, #tpu.memory_space<vmem>>, vector<8x128xf32>
    tpu.vector_store %arg6[%c0_6, %c0_7], %7 {strides = array<i32>} : memref<8x128xf32, #tpu.memory_space<vmem>>, vector<8x128xf32>,
    %c0_i32_8 = arith.constant 0 : i32
    %9 = arith.cmpi eq, %arg1, %c0_i32_8 : i32
    %10 = arith.extui %9 : i1 to i32
    %c0_i32_9 = arith.constant 0 : i32
    %11 = arith.cmpi ne, %10, %c0_i32_9 : i32
    scf.if %11 {
      %c0_10 = arith.constant 0 : index
      %c0_11 = arith.constant 0 : index
      %12 = vector.load %arg6[%c0_10, %c0_11] : memref<8x128xf32, #tpu.memory_space<vmem>>, vector<8x128xf32>
      %c0_12 = arith.constant 0 : index
      %c0_13 = arith.constant 0 : index
      %13 = vector.load %arg4[%c0_12, %c0_13] : memref<1x128xf32, #tpu.memory_space<vmem>>, vector<1x128xf32>
      %14 = vector.broadcast %13 : vector<1x128xf32> to vector<8x128xf32>
      %15 = arith.addf %12, %14 : vector<8x128xf32>
      %cst_14 = arith.constant dense<0xFF800000> : vector<8xf32>
      %16 = vector.multi_reduction <maximumf>, %15, %cst_14 [1] : vector<8x128xf32> to vector<8xf32>
      %17 = vector.shape_cast %16 : vector<8xf32> to vector<8x1xf32>
      %18 = vector.broadcast %17 : vector<8x1xf32> to vector<8x128xf32>
      %19 = arith.subf %15, %18 : vector<8x128xf32>
      %20 = math.exp %19 : vector<8x128xf32>
      %cst_15 = arith.constant dense<0.000000e+00> : vector<8xf32>
      %21 = vector.multi_reduction <add>, %20, %cst_15 [1] : vector<8x128xf32> to vector<8xf32>
      %22 = vector.shape_cast %21 : vector<8xf32> to vector<8x1xf32>
      %23 = tpu.reciprocal %22 {approx = true} : vector<8x1xf32> -> vector<8x1xf32>
      %24 = arith.mulf %22, %23 : vector<8x1xf32>
      %cst_16 = arith.constant 2.000000e+00 : f32
      %25 = vector.broadcast %cst_16 : f32 to vector<8x1xf32>
      %26 = arith.subf %25, %24 : vector<8x1xf32>
      %27 = arith.mulf %23, %26 : vector<8x1xf32>
      %28 = vector.broadcast %27 : vector<8x1xf32> to vector<8x128xf32>
      %29 = arith.mulf %20, %28 : vector<8x128xf32>
      %c0_17 = arith.constant 0 : index
      %c0_18 = arith.constant 0 : index
      %30 = vector.load %arg5[%c0_17, %c0_18] : memref<8x128xf32, #tpu.memory_space<vmem>>, vector<8x128xf32>
      tpu.vector_store %arg5[%c0_17, %c0_18], %29 {strides = array<i32>} : memref<8x128xf32, #tpu.memory_space<vmem>>, vector<8x128xf32>,
    } else {
    }
    return
  }
  func.func @transform_0(%arg0: i32, %arg1: i32) -> (i32, i32) {
    %c0_i32 = arith.constant 0 : i32
    return %arg0, %arg1 : i32, i32
  }
  func.func @transform_1(%arg0: i32, %arg1: i32) -> (i32, i32) {
    %c0_i32 = arith.constant 0 : i32
    %c0_i32_0 = arith.constant 0 : i32
    return %arg1, %c0_i32 : i32, i32
  }
  func.func @transform_2(%arg0: i32, %arg1: i32) -> (i32, i32) {
    %c0_i32 = arith.constant 0 : i32
    %c0_i32_0 = arith.constant 0 : i32
    %c0_i32_1 = arith.constant 0 : i32
    return %c0_i32, %c0_i32_0 : i32, i32
  }
  func.func @transform_3(%arg0: i32, %arg1: i32) -> (i32, i32) {
    %c0_i32 = arith.constant 0 : i32
    %c0_i32_0 = arith.constant 0 : i32
    return %arg0, %c0_i32 : i32, i32
  }
}

</mosaic_0001>

<llo_original>
// kernel: tpu_custom_call.1
$region0: #{tpu_custom_call.1}
  #allocation0 [shape = 'u32[]', space=smem, size = 0x4, offset = 0x4, fixed_abs, tag = 'smem constant byte address 0x4 - core index']
  #allocation1 [shape = 'u32[144,128]{1,0:T(1,128)}', space=vmem, size = 0x12000, scoped, tag = 'internal scratch']
  #allocation2 [shape = 'f32[8,128]{1,0:T(8,128)}', space=vmem, size = 0x1000, scoped, tag = 'scratch operand']
  %s0 = inlined_call_operand.hbm [shape: bf16[8,32], index: 0, kind: input, shape index: {}]
  %s1 = inlined_call_operand.hbm [shape: bf16[32,128], index: 1, kind: input, shape index: {}]
  %s2 = inlined_call_operand.vmem [shape: f32[1,128], index: 2, kind: input, shape index: {}]
  %s3 = inlined_call_operand.hbm [shape: f32[8,128], index: 3, kind: output, shape index: {}]
  %s4 = sld [smem:[#allocation0]]
  $region38: #{tpu_custom_call.1} parent=0
    _
  %s6 = ssub.s32 1, %s4
  %s7 = scalar_select 0, %s6, %s4
  $region1: #{tpu_custom_call.1} parent=0
    #allocation3 [shape = 'u8[2048]{0}', space=vmem, size = 0x800, scoped, tag = 'input window, operand 0, single buffered']
    #allocation4 [shape = 's32[1]{0}', space=sflag, size = 0x4, scoped, tag = 'scoped memory for tpu_custom_call.1']
    #allocation5 [shape = 's32[1]{0}', space=sflag, size = 0x4, scoped, tag = 'scoped memory for tpu_custom_call.1']
    #allocation6 [shape = 'u8[8192]{0}', space=vmem, size = 0x2000, scoped, tag = 'input window, operand 1, single buffered']
    #allocation7 [shape = 's32[1]{0}', space=sflag, size = 0x4, scoped, tag = 'scoped memory for tpu_custom_call.1']
    #allocation8 [shape = 'u8[4096]{0}', space=vmem, size = 0x1000, scoped, tag = 'output window, operand 0, single buffered']
    %8 = vsyncpa [#allocation4], 0
    %9 = vsyncpa [#allocation7], 0
    %10 = vsyncpa [#allocation5], 0
    // Predicated region
    $region2: #{tpu_custom_call.1} parent=1 // pred_check
      _
    $region3: #{tpu_custom_call.1} parent=1 // pred_check_branch
      %12 = sbr.rel (0) target = $region5
    $region4: #{tpu_custom_call.1} parent=1 // pred_region
      %s14 = ssub.s32 64, 64
      %15 = vsyncadd [#allocation4], %s14
      %s17 = sshll.u32 [#allocation3], 4
      %s18 = int_to_ptr.vmem [resolvable:$true] %s17
      %20 = dma.hbm_to_vmem [thread:$0]  %s0, 64, %s18, [#allocation4]
    $region5: #{tpu_custom_call.1} parent=1 // pred_fallthru
      _
    // Predicated region
    $region6: #{tpu_custom_call.1} parent=1 // pred_check
      _
    $region7: #{tpu_custom_call.1} parent=1 // pred_check_branch
      %22 = sbr.rel (0) target = $region9
    $region8: #{tpu_custom_call.1} parent=1 // pred_region
      %s24 = ssub.s32 256, 256
      %25 = vsyncadd [#allocation7], %s24
      %s26 = sshll.u32 [#allocation6], 4
      %s27 = int_to_ptr.vmem [resolvable:$true] %s26
      %32 = dma.hbm_to_vmem [thread:$0]  %s1, 256, %s27, [#allocation7], 64, 64, 4
    $region9: #{tpu_custom_call.1} parent=1 // pred_fallthru
      _
    // Predicated region
    $region10: #{tpu_custom_call.1} parent=1 // pred_check
      _
    $region11: #{tpu_custom_call.1} parent=1 // pred_check_branch
      %34 = sbr.rel (0) target = $region13
    $region12: #{tpu_custom_call.1} parent=1 // pred_region
      _
    $region13: #{tpu_custom_call.1} parent=1 // pred_fallthru
      _
    // Predicated region
    $region14: #{tpu_custom_call.1} parent=1 // pred_check
      _
    $region15: #{tpu_custom_call.1} parent=1 // pred_check_branch
      %36 = sbr.rel (0) target = $region17
    $region16: #{tpu_custom_call.1} parent=1 // pred_region
      %37 = dma.done [#allocation4], 64
    $region17: #{tpu_custom_call.1} parent=1 // pred_fallthru
      _
    // Predicated region
    $region18: #{tpu_custom_call.1} parent=1 // pred_check
      _
    $region19: #{tpu_custom_call.1} parent=1 // pred_check_branch
      %39 = sbr.rel (0) target = $region21
    $region20: #{tpu_custom_call.1} parent=1 // pred_region
      %40 = dma.done [#allocation7], 256
    $region21: #{tpu_custom_call.1} parent=1 // pred_fallthru
      _
    %p42 = scmp.eq.s32.totalorder 0, 0
    // Predicated region
    $region22: #{tpu_custom_call.1} parent=1 // pred_check
      %p43 = pneg %p42
    $region23: #{tpu_custom_call.1} parent=1 // pred_check_branch
      %45 = sbr.rel (%p43) target = $region25
    $region24: #{tpu_custom_call.1} parent=1 // pred_region
      %46 = vst [vmem:[#allocation2] sm:$0xff] 0.0
    $region25: #{tpu_custom_call.1} parent=1 // pred_fallthru
      _
    %v47 = vld [vmem:[#allocation2] sm:$0xff]
    %v48 = vld [vmem:[#allocation3] sm:$0xf]
    %v49 = vld [vmem:[#allocation6] sm:$0xf]
    %v50 = vld [vmem:[#allocation6 + $0x4] sm:$0xf]
    %v51 = vld [vmem:[#allocation6 + $0x8] sm:$0xf]
    %v52 = vld [vmem:[#allocation6 + $0xc] sm:$0xf]
    %v57 = vunpack.c.l.b16 %v49
    %v58 = vunpack.c.l.b16 %v50
    %v59 = vunpack.c.l.b16 %v51
    %v60 = vunpack.c.l.b16 %v52
    %v61 = vpack.c.b16 %v58, %v57
    %v62 = vpack.c.b16 %v60, %v59
    %vm65 = vcmask 261120
    %v67 = vsel %vm65, %v48, 0
    %69 = vmatprep.subr.bf16.mxu0 0
    %70 = vmatpush1.bf16.msra.mxu0 %v61
    %71 = vmatprep.subr.bf16.mxu0 0
    %72 = vmatpush1.bf16.msra.mxu0 %v62
    %73 = vmatprep.subr.bf16.mxu0 0
    %74 = vmatpush1.bf16.msra.mxu0 0
    %75 = vmatprep.subr.bf16.mxu0 0
    %76 = vmatpush1.bf16.msra.mxu0 0
    %77 = vmatprep.subr.bf16.mxu0 0
    %78 = vmatpush1.bf16.msra.mxu0 0
    %79 = vmatprep.subr.bf16.mxu0 0
    %80 = vmatpush1.bf16.msra.mxu0 0
    %81 = vmatprep.subr.bf16.mxu0 0
    %82 = vmatpush1.bf16.msra.mxu0 0
    %83 = vmatprep.subr.bf16.mxu0 0
    %84 = vmatpush1.bf16.msra.mxu0 0
    %85 = vmatprep.subr.bf16.mxu0 0
    %86 = vmatpush1.bf16.msra.mxu0 0
    %87 = vmatprep.subr.bf16.mxu0 0
    %88 = vmatpush1.bf16.msra.mxu0 0
    %89 = vmatprep.subr.bf16.mxu0 0
    %90 = vmatpush1.bf16.msra.mxu0 0
    %91 = vmatprep.subr.bf16.mxu0 0
    %92 = vmatpush1.bf16.msra.mxu0 0
    %93 = vmatprep.subr.bf16.mxu0 0
    %94 = vmatpush1.bf16.msra.mxu0 0
    %95 = vmatprep.subr.bf16.mxu0 0
    %96 = vmatpush1.bf16.msra.mxu0 0
    %97 = vmatprep.subr.bf16.mxu0 0
    %98 = vmatpush1.bf16.msra.mxu0 0
    %99 = vmatprep.subr.bf16.mxu0 0
    %100 = vmatpush1.bf16.msra.mxu0 0
    %101 = vmatprep.mubr.bf16.mxu0 0
    %102 = vmatmul.mubr.bf16.gmra.mrb[0].mxu0 %v67
    %v103 = vpop.f32.mrb[0].mxu0
    %v104 = vadd.f32 0.0, %v103
    %v105 = vpop.f32.mrb[0].mxu0
    %v106 = vpop.f32.mrb[0].mxu0
    %v107 = vpop.f32.mrb[0].mxu0
    %108 = vdwg.mxu0
    %v109 = vadd.f32 %v47, %v104
    %110 = vst [vmem:[#allocation2] sm:$0xff] %v109
    // Predicated region
    $region26: #{tpu_custom_call.1} parent=1 // pred_check
      %p111 = pneg %p42
    $region27: #{tpu_custom_call.1} parent=1 // pred_check_branch
      %113 = sbr.rel (%p111) target = $region29
    $region28: #{tpu_custom_call.1} parent=1 // pred_region
      %v114 = vld [vmem:[#allocation2] sm:$0xff]
      %v115 = vld [vmem:[%s2] sm:$0x1]
      %v117 = vlaneseq
      %v118 = vshrl.u32 %v117, 7
      %v119 = vsub.s32 0, %v118
      %v120 = vrot.slane %v115, %v119
      %v122 = vadd.f32 %v114, %v120
      %123 = vmax.xlane.f32.xlu0 %v122
      %v124 = vpop.xlane.xlu0 %123
      %v125 = vsub.f32 %v122, %v124
      %v126 = vmul.f32 %v125, 1.442695
      %v127 = vpow.pop %v126
      %128 = vadd.xlane.f32.xlu0 %v127
      %v129 = vpop.xlane.xlu0 %128
      %v130 = vrcp.pop %v129
      %v131 = vmul.f32 %v129, %v130
      %v132 = vsub.f32 2.0, %v131
      %v133 = vmul.f32 %v130, %v132
      %v134 = vmul.f32 %v127, %v133
      %135 = vst [vmem:[#allocation8] sm:$0xff] %v134
    $region29: #{tpu_custom_call.1} parent=1 // pred_fallthru
      _
    // Predicated region
    $region30: #{tpu_custom_call.1} parent=1 // pred_check
      _
    $region31: #{tpu_custom_call.1} parent=1 // pred_check_branch
      %137 = sbr.rel (0) target = $region33
    $region32: #{tpu_custom_call.1} parent=1 // pred_region
      %s139 = ssub.s32 128, 128
      %140 = vsyncadd [#allocation5], %s139
      %s142 = sshll.u32 [#allocation8], 4
      %s143 = int_to_ptr.vmem [resolvable:$true] %s142
      %145 = dma.vmem_to_hbm [thread:$0]  %s143, 128, %s3, [#allocation5]
    $region33: #{tpu_custom_call.1} parent=1 // pred_fallthru
      _
    // Predicated region
    $region34: #{tpu_custom_call.1} parent=1 // pred_check
      _
    $region35: #{tpu_custom_call.1} parent=1 // pred_check_branch
      %147 = sbr.rel (0) target = $region37
    $region36: #{tpu_custom_call.1} parent=1 // pred_region
      %148 = dma.done [#allocation5], 128
    $region37: #{tpu_custom_call.1} parent=1 // pred_fallthru
      _
    %149 = vsyncpa [#allocation4], 1
    %150 = vsyncpa [#allocation7], 1
    %151 = vsyncpa [#allocation5], 1

</llo_original>
